<compile_context>
chip_gen: v7x
topology: tpu7x:2x2x1
jax: 0.10.0
libtpu: 0.0.40
codegen_flags: <defaults>
</compile_context>

<pallas_src>
import jax
import jax.numpy as jnp
from jax.experimental import pallas as pl
from jax.experimental.pallas import tpu as pltpu

_NEG = -1e30  # Python float "-inf" stand-in: no const capture, no inf arithmetic


def _round_up(x, m):
    return ((x + m - 1) // m) * m


def _mlp_logits(s, w1, b1, w2, b2, w3, b3, row_offset, n_valid):
    """relu(s@w1+b1) -> relu(@w2+b2) -> @w3+b3; padded rows masked to -1e30."""
    h1 = jnp.maximum(jnp.dot(s, w1, preferred_element_type=jnp.float32) + b1, 0.0)
    h2 = jnp.maximum(jnp.dot(h1, w2, preferred_element_type=jnp.float32) + b2, 0.0)
    logits = jnp.dot(h2, w3, preferred_element_type=jnp.float32) + b3
    row = jax.lax.broadcasted_iota(jnp.int32, logits.shape, 0) + row_offset
    return jnp.where(row < n_valid, logits, _NEG)


# --------------------------------------------------------------------------
# Path 1: single tile (common per-step RL call) -> one launch, all in VMEM.
# --------------------------------------------------------------------------
def _make_small_kernel(n_valid):
    def kernel(s_ref, w1_ref, b1_ref, w2_ref, b2_ref, w3_ref, b3_ref, out_ref):
        logits = _mlp_logits(s_ref[...], w1_ref[...], b1_ref[...], w2_ref[...],
                             b2_ref[...], w3_ref[...], b3_ref[...], 0, n_valid)
        m = jnp.max(logits, axis=0, keepdims=True)       # softmax over N axis
        p = jnp.exp(logits - m)
        l = jnp.sum(p, axis=0, keepdims=True)
        out_ref[...] = p * (1.0 / l)
    return kernel


# --------------------------------------------------------------------------
# Path 2: fused 2-phase kernel, exp tiles resident in a VMEM scratch.
#   phase 0: MLP + online (max, exp-sum) over N, exp tiles -> VMEM scratch
#   phase 1: rescale with global stats and write probs (lane-dense stores)
# --------------------------------------------------------------------------
def _make_fused_kernel(tile_n, num_tiles, n_valid):
    def kernel(s_ref, w1_ref, b1_ref, w2_ref, b2_ref, w3_ref, b3_ref,
               out_ref, p_scr, m_snap, m_run, l_run):
        phase = pl.program_id(0)
        i = pl.program_id(1)

        @pl.when(phase == 0)
        def _phase0():
            logits = _mlp_logits(s_ref[...], w1_ref[...], b1_ref[...],
                                 w2_ref[...], b2_ref[...], w3_ref[...],
                                 b3_ref[...], i * tile_n, n_valid)

            @pl.when(i == 0)
            def _init():
                m_run[...] = jnp.full_like(m_run, _NEG)
                l_run[...] = jnp.zeros_like(l_run)

            m_old = m_run[...]
            m_new = jnp.maximum(m_old, jnp.max(logits, axis=0, keepdims=True))
            p = jnp.exp(logits - m_new)          # padded rows -> exactly 0
            p_scr[i] = p                         # stays in VMEM (no HBM trip)
            m_snap[i] = m_new                    # per-tile running-max snapshot
            l_run[...] = (l_run[...] * jnp.exp(m_old - m_new)
                          + jnp.sum(p, axis=0, keepdims=True))
            m_run[...] = m_new

            @pl.when(i == num_tiles - 1)
            def _finalize():
                l_run[...] = 1.0 / l_run[...]    # hoisted reciprocal (once)

        @pl.when(phase == 1)
        def _phase1():
            # out = p_i * exp(m_i - m_final) * inv(sum): one (1,128) exp/tile.
            scale = jnp.exp(m_snap[i] - m_run[...]) * l_run[...]
            out_ref[...] = p_scr[i] * scale
    return kernel


# --------------------------------------------------------------------------
# Path 3: two-pass HBM fallback (resident exp scratch would not fit VMEM).
# --------------------------------------------------------------------------
def _make_pass1_kernel(tile_n, num_tiles, n_valid):
    def kernel(s_ref, w1_ref, b1_ref, w2_ref, b2_ref, w3_ref, b3_ref,
               p_ref, msnap_ref, mfin_ref, linv_ref):
        i = pl.program_id(0)
        logits = _mlp_logits(s_ref[...], w1_ref[...], b1_ref[...], w2_ref[...],
                             b2_ref[...], w3_ref[...], b3_ref[...],
                             i * tile_n, n_valid)

        @pl.when(i == 0)
        def _init():
            mfin_ref[...] = jnp.full_like(mfin_ref, _NEG)
            linv_ref[...] = jnp.zeros_like(linv_ref)

        m_old = mfin_ref[...]
        m_new = jnp.maximum(m_old, jnp.max(logits, axis=0, keepdims=True))
        p = jnp.exp(logits - m_new)
        p_ref[...] = p
        msnap_ref[0] = m_new
        linv_ref[...] = (linv_ref[...] * jnp.exp(m_old - m_new)
                         + jnp.sum(p, axis=0, keepdims=True))
        mfin_ref[...] = m_new

        @pl.when(i == num_tiles - 1)
        def _finalize():
            linv_ref[...] = 1.0 / linv_ref[...]   # emit inv(sum), not sum
    return kernel


def _pass2_kernel(p_ref, msnap_ref, mfin_ref, linv_ref, out_ref):
    # Pure VPU multiply + DMA: no dense exp, no divide in the hot loop.
    scale = jnp.exp(msnap_ref[0] - mfin_ref[...]) * linv_ref[...]
    out_ref[...] = p_ref[...] * scale


# --------------------------------------------------------------------------
# Wrapper
# --------------------------------------------------------------------------
def actor_forward(states, params, tile_n=None, force_two_pass=False,
                  fused_scratch_budget_bytes=8 << 20):
    """states: (N, n_features) float32.  Returns (1, N, n_actions) float32."""
    w1, b1, w2, b2, w3, b3 = params
    n, f = states.shape
    n_actions = w3.shape[1]

    # Lane-dense action padding (all kernel stores are unmasked 128-wide).
    a_pad = _round_up(max(n_actions, 1), 128)
    w3p = jnp.zeros((w3.shape[0], a_pad), jnp.float32).at[:, :n_actions].set(
        w3.astype(jnp.float32))
    b3p = jnp.zeros((1, a_pad), jnp.float32).at[:, :n_actions].set(
        b3.reshape(1, -1).astype(jnp.float32))
    wargs = (w1.astype(jnp.float32), b1.reshape(1, -1).astype(jnp.float32),
             w2.astype(jnp.float32), b2.reshape(1, -1).astype(jnp.float32),
             w3p, b3p)

    # N tiling: large MXU-aligned tiles (amortize ~0.35us/grid-step overhead),
    # single full-size tile for small N.
    if tile_n is None:
        tile_n = 1024 if n > 1024 else _round_up(n, 8)
    else:
        tile_n = _round_up(max(tile_n, 8), 8)
    n_pad = _round_up(n, tile_n)
    num_tiles = n_pad // tile_n

    s_pad = jnp.zeros((n_pad, f), jnp.float32).at[:n, :].set(
        states.astype(jnp.float32))

    weight_specs_1 = [pl.BlockSpec(a.shape, lambda i: (0, 0)) for a in wargs]
    weight_specs_2 = [pl.BlockSpec(a.shape, lambda ph, i: (0, 0)) for a in wargs]

    p_scratch_bytes = n_pad * a_pad * 4
    use_small = (num_tiles == 1) and not force_two_pass
    use_fused = ((not use_small) and (not force_two_pass)
                 and p_scratch_bytes <= fused_scratch_budget_bytes)

    if use_small:
        probs = pl.pallas_call(
            _make_small_kernel(n),
            out_shape=jax.ShapeDtypeStruct((n_pad, a_pad), jnp.float32),
            grid_spec=pltpu.PrefetchScalarGridSpec(
                num_scalar_prefetch=0,
                grid=(1,),
                in_specs=[pl.BlockSpec((n_pad, f), lambda i: (0, 0))]
                         + weight_specs_1,
                out_specs=pl.BlockSpec((n_pad, a_pad), lambda i: (0, 0)),
            ),
            compiler_params=pltpu.CompilerParams(
                dimension_semantics=("arbitrary",)),
        )(s_pad, *wargs)

    elif use_fused:
        # Explicit VMEM budget: resident exp scratch + pipeline buffers stays
        # well under v7x's 64 MiB (and v5e's smaller default scoped limit).
        vmem_limit = int(min(32 << 20,
                             max(16 << 20, p_scratch_bytes + (8 << 20))))
        probs = pl.pallas_call(
            _make_fused_kernel(tile_n, num_tiles, n),
            out_shape=jax.ShapeDtypeStruct((n_pad, a_pad), jnp.float32),
            grid_spec=pltpu.PrefetchScalarGridSpec(
                num_scalar_prefetch=0,
                grid=(2, num_tiles),          # (phase, N-tile); phase is slow
                in_specs=[pl.BlockSpec((tile_n, f),
                                       lambda ph, i: (i * (1 - ph), 0))]
                         + weight_specs_2,
                out_specs=pl.BlockSpec((tile_n, a_pad),
                                       lambda ph, i: (ph * i, 0)),
                scratch_shapes=[
                    pltpu.VMEM((num_tiles, tile_n, a_pad), jnp.float32),  # exp tiles
                    pltpu.VMEM((num_tiles, 1, a_pad), jnp.float32),       # max snaps
                    pltpu.VMEM((1, a_pad), jnp.float32),                  # running max
                    pltpu.VMEM((1, a_pad), jnp.float32),                  # running sum
                ],
            ),
            compiler_params=pltpu.CompilerParams(
                dimension_semantics=("arbitrary", "arbitrary"),
                vmem_limit_bytes=vmem_limit),
        )(s_pad, *wargs)

    else:
        # Two-pass fallback: pass 1 = MLP + stats (exp tiles + max snapshots to
        # HBM), pass 2 = broadcast rescale (megacore-parallel).
        p_tiles, m_snap, m_fin, l_inv = pl.pallas_call(
            _make_pass1_kernel(tile_n, num_tiles, n),
            out_shape=(
                jax.ShapeDtypeStruct((n_pad, a_pad), jnp.float32),
                jax.ShapeDtypeStruct((num_tiles, 1, a_pad), jnp.float32),
                jax.ShapeDtypeStruct((1, a_pad), jnp.float32),
                jax.ShapeDtypeStruct((1, a_pad), jnp.float32),
            ),
            grid_spec=pltpu.PrefetchScalarGridSpec(
                num_scalar_prefetch=0,
                grid=(num_tiles,),
                in_specs=[pl.BlockSpec((tile_n, f), lambda i: (i, 0))]
                         + weight_specs_1,
                out_specs=(
                    pl.BlockSpec((tile_n, a_pad), lambda i: (i, 0)),
                    pl.BlockSpec((1, 1, a_pad), lambda i: (i, 0, 0)),
                    pl.BlockSpec((1, a_pad), lambda i: (0, 0)),
                    pl.BlockSpec((1, a_pad), lambda i: (0, 0)),
                ),
            ),
            compiler_params=pltpu.CompilerParams(
                dimension_semantics=("arbitrary",)),
        )(s_pad, *wargs)

        probs = pl.pallas_call(
            _pass2_kernel,
            out_shape=jax.ShapeDtypeStruct((n_pad, a_pad), jnp.float32),
            grid_spec=pltpu.PrefetchScalarGridSpec(
                num_scalar_prefetch=0,
                grid=(num_tiles,),
                in_specs=[
                    pl.BlockSpec((tile_n, a_pad), lambda i: (i, 0)),
                    pl.BlockSpec((1, 1, a_pad), lambda i: (i, 0, 0)),
                    pl.BlockSpec((1, a_pad), lambda i: (0, 0)),
                    pl.BlockSpec((1, a_pad), lambda i: (0, 0)),
                ],
                out_specs=pl.BlockSpec((tile_n, a_pad), lambda i: (i, 0)),
            ),
            compiler_params=pltpu.CompilerParams(
                dimension_semantics=("parallel",)),
        )(p_tiles, m_snap, m_fin, l_inv)

    # Drop padding, restore the torch unsqueeze(0) batch dim -> (1, N, A).
    return probs[:n, :n_actions][None, :, :]


# --------------------------------------------------------------------------
# Parameters / reference / test
# --------------------------------------------------------------------------
def init_actor_params(key, n_features, n_actions, hidden_size=(128, 128)):
    """Deterministic synthetic parameter init (Linear: W[in,out], b[1,out])."""
    params = []
    last = n_features
    dims = list(hidden_size) + [n_actions]
    for nh in dims:
        kw, kb, key = jax.random.split(key, 3)
        bound = 1.0 / (last ** 0.5)
        w = jax.random.uniform(kw, (last, nh), jnp.float32, -bound, bound)
        b = jax.random.uniform(kb, (1, nh), jnp.float32, -bound, bound)
        params += [w, b]
        last = nh
    return tuple(params)


def _reference_forward(states, params):
    w1, b1, w2, b2, w3, b3 = params
    hi = jax.lax.Precision.HIGHEST
    s = states[None, :, :].astype(jnp.float32)
    s = jnp.maximum(jnp.einsum("bnf,fh->bnh", s, w1, precision=hi) + b1, 0.0)
    s = jnp.maximum(jnp.einsum("bnf,fh->bnh", s, w2, precision=hi) + b2, 0.0)
    logits = jnp.einsum("bnf,fa->bna", s, w3, precision=hi) + b3
    return jax.nn.softmax(logits, axis=1)   # softmax over N (dim=1), as torch


if __name__ == "__main__":
    key = jax.random.PRNGKey(0)
    n_features, n_actions = 32, 8
    k_params, k_s1, k_s2 = jax.random.split(key, 3)
    params = init_actor_params(k_params, n_features, n_actions)

    # Tolerance accommodates MXU f32 pass/accumulation-order differences
    # between the Pallas kernels and the XLA reference; any structural bug
    # (wrong softmax axis, mask leak, bad cross-tile accumulation) is orders
    # of magnitude larger.
    def _check(states, out):
        ref = _reference_forward(states, params)
        assert out.shape == ref.shape
        assert jnp.allclose(out, ref, atol=2e-3, rtol=2e-2), \
            float(jnp.max(jnp.abs(out - ref)))

    # Case 1: tiny state stack (typical per-step RL call) -> single fused
    # kernel, one launch, no intermediates.
    states1 = jax.random.normal(k_s1, (8, n_features), jnp.float32)
    out1 = actor_forward(states1, params)
    jax.block_until_ready(out1)
    assert out1.shape == (1, 8, n_actions)
    _check(states1, out1)

    # Case 2: multiple N-tiles with a padded last tile -> fused 2-phase kernel
    # with VMEM-resident exp tiles; exercises the cross-tile online softmax.
    states2 = jax.random.normal(k_s2, (20, n_features), jnp.float32)
    out2 = actor_forward(states2, params, tile_n=8)
    jax.block_until_ready(out2)
    assert out2.shape == (1, 20, n_actions)
    _check(states2, out2)

    # Case 3: same input through the two-pass HBM fallback path (used when the
    # resident exp scratch would exceed the VMEM budget).
    out3 = actor_forward(states2, params, tile_n=8, force_two_pass=True)
    jax.block_until_ready(out3)
    _check(states2, out3)

    print("KERNEL_OK")
</pallas_src>

<mosaic_0001>
module attributes {stable_mosaic.version = 11 : i64} {
  func.func @kernel(%arg0: i32, %arg1: memref<8x32xf32, #tpu.memory_space<vmem>>, %arg2: memref<32x128xf32, #tpu.memory_space<vmem>>, %arg3: memref<1x128xf32, #tpu.memory_space<vmem>>, %arg4: memref<128x128xf32, #tpu.memory_space<vmem>>, %arg5: memref<1x128xf32, #tpu.memory_space<vmem>>, %arg6: memref<128x128xf32, #tpu.memory_space<vmem>>, %arg7: memref<1x128xf32, #tpu.memory_space<vmem>>, %arg8: memref<8x128xf32, #tpu.memory_space<vmem>>) attributes {dimension_semantics = [#tpu.dimension_semantics<arbitrary>], iteration_bounds = array<i64: 1>, scalar_prefetch = 0 : i64, scratch_operands = 0 : i64, tpu.core_type = #tpu.core_type<tc>, window_params = [{pipeline_mode = #tpu.pipeline_mode<synchronous>, transform_indices = @transform_0, window_bounds = array<i64: 8, 32>}, {pipeline_mode = #tpu.pipeline_mode<synchronous>, transform_indices = @transform_1, window_bounds = array<i64: 32, 128>}, {pipeline_mode = #tpu.pipeline_mode<synchronous>, transform_indices = @transform_2, window_bounds = array<i64: 1, 128>}, {pipeline_mode = #tpu.pipeline_mode<synchronous>, transform_indices = @transform_3, window_bounds = array<i64: 128, 128>}, {pipeline_mode = #tpu.pipeline_mode<synchronous>, transform_indices = @transform_4, window_bounds = array<i64: 1, 128>}, {pipeline_mode = #tpu.pipeline_mode<synchronous>, transform_indices = @transform_5, window_bounds = array<i64: 128, 128>}, {pipeline_mode = #tpu.pipeline_mode<synchronous>, transform_indices = @transform_6, window_bounds = array<i64: 1, 128>}, {pipeline_mode = #tpu.pipeline_mode<synchronous>, transform_indices = @transform_7, window_bounds = array<i64: 8, 128>}]} {
    %c0 = arith.constant 0 : index
    %c0_0 = arith.constant 0 : index
    %0 = vector.load %arg1[%c0, %c0_0] : memref<8x32xf32, #tpu.memory_space<vmem>>, vector<8x32xf32>
    %c0_1 = arith.constant 0 : index
    %c0_2 = arith.constant 0 : index
    %1 = vector.load %arg2[%c0_1, %c0_2] : memref<32x128xf32, #tpu.memory_space<vmem>>, vector<32x128xf32>
    %c0_3 = arith.constant 0 : index
    %c0_4 = arith.constant 0 : index
    %2 = vector.load %arg3[%c0_3, %c0_4] : memref<1x128xf32, #tpu.memory_space<vmem>>, vector<1x128xf32>
    %c0_5 = arith.constant 0 : index
    %c0_6 = arith.constant 0 : index
    %3 = vector.load %arg4[%c0_5, %c0_6] : memref<128x128xf32, #tpu.memory_space<vmem>>, vector<128x128xf32>
    %c0_7 = arith.constant 0 : index
    %c0_8 = arith.constant 0 : index
    %4 = vector.load %arg5[%c0_7, %c0_8] : memref<1x128xf32, #tpu.memory_space<vmem>>, vector<1x128xf32>
    %c0_9 = arith.constant 0 : index
    %c0_10 = arith.constant 0 : index
    %5 = vector.load %arg6[%c0_9, %c0_10] : memref<128x128xf32, #tpu.memory_space<vmem>>, vector<128x128xf32>
    %c0_11 = arith.constant 0 : index
    %c0_12 = arith.constant 0 : index
    %6 = vector.load %arg7[%c0_11, %c0_12] : memref<1x128xf32, #tpu.memory_space<vmem>>, vector<1x128xf32>
    %cst = arith.constant dense<0.000000e+00> : vector<8x128xf32>
    %7 = tpu.matmul %0, %1, %cst {dimension_numbers = #tpu.dot_dimension_numbers<[1], [0], [0], [1], [0, 0, 1, 1], [], []>} : vector<8x32xf32>, vector<32x128xf32>, vector<8x128xf32> -> vector<8x128xf32>
    %8 = vector.broadcast %2 : vector<1x128xf32> to vector<8x128xf32>
    %9 = arith.addf %7, %8 : vector<8x128xf32>
    %cst_13 = arith.constant 0.000000e+00 : f32
    %10 = vector.broadcast %cst_13 : f32 to vector<8x128xf32>
    %11 = arith.maximumf %9, %10 : vector<8x128xf32>
    %cst_14 = arith.constant dense<0.000000e+00> : vector<8x128xf32>
    %12 = tpu.matmul %11, %3, %cst_14 {dimension_numbers = #tpu.dot_dimension_numbers<[1], [0], [0], [1], [0, 0, 1, 1], [], []>} : vector<8x128xf32>, vector<128x128xf32>, vector<8x128xf32> -> vector<8x128xf32>
    %13 = vector.broadcast %4 : vector<1x128xf32> to vector<8x128xf32>
    %14 = arith.addf %12, %13 : vector<8x128xf32>
    %cst_15 = arith.constant 0.000000e+00 : f32
    %15 = vector.broadcast %cst_15 : f32 to vector<8x128xf32>
    %16 = arith.maximumf %14, %15 : vector<8x128xf32>
    %cst_16 = arith.constant dense<0.000000e+00> : vector<8x128xf32>
    %17 = tpu.matmul %16, %5, %cst_16 {dimension_numbers = #tpu.dot_dimension_numbers<[1], [0], [0], [1], [0, 0, 1, 1], [], []>} : vector<8x128xf32>, vector<128x128xf32>, vector<8x128xf32> -> vector<8x128xf32>
    %18 = vector.broadcast %6 : vector<1x128xf32> to vector<8x128xf32>
    %19 = arith.addf %17, %18 : vector<8x128xf32>
    %20 = tpu.iota {dimensions = array<i32: 0>} : vector<8x128xi32>
    %c0_i32 = arith.constant 0 : i32
    %21 = vector.broadcast %c0_i32 : i32 to vector<8x128xi32>
    %22 = arith.addi %20, %21 : vector<8x128xi32>
    %c8_i32 = arith.constant 8 : i32
    %23 = vector.broadcast %c8_i32 : i32 to vector<8x128xi32>
    %24 = arith.cmpi slt, %22, %23 : vector<8x128xi32>
    %cst_17 = arith.constant -1.000000e+30 : f32
    %25 = vector.broadcast %cst_17 : f32 to vector<8x128xf32>
    %26 = arith.select %24, %19, %25 : vector<8x128xi1>, vector<8x128xf32>
    %cst_18 = arith.constant dense<0xFF800000> : vector<128xf32>
    %27 = vector.multi_reduction <maximumf>, %26, %cst_18 [0] : vector<8x128xf32> to vector<128xf32>
    %28 = vector.shape_cast %27 : vector<128xf32> to vector<1x128xf32>
    %29 = vector.broadcast %28 : vector<1x128xf32> to vector<8x128xf32>
    %30 = arith.subf %26, %29 : vector<8x128xf32>
    %31 = math.exp %30 : vector<8x128xf32>
    %cst_19 = arith.constant dense<0.000000e+00> : vector<128xf32>
    %32 = vector.multi_reduction <add>, %31, %cst_19 [0] : vector<8x128xf32> to vector<128xf32>
    %33 = vector.shape_cast %32 : vector<128xf32> to vector<1x128xf32>
    %cst_20 = arith.constant 1.000000e+00 : f32
    %34 = vector.broadcast %cst_20 : f32 to vector<1x128xf32>
    %35 = arith.divf %34, %33 : vector<1x128xf32>
    %36 = vector.broadcast %35 : vector<1x128xf32> to vector<8x128xf32>
    %37 = arith.mulf %31, %36 : vector<8x128xf32>
    %c0_21 = arith.constant 0 : index
    %c0_22 = arith.constant 0 : index
    %38 = vector.load %arg8[%c0_21, %c0_22] : memref<8x128xf32, #tpu.memory_space<vmem>>, vector<8x128xf32>
    tpu.vector_store %arg8[%c0_21, %c0_22], %37 {strides = array<i32>} : memref<8x128xf32, #tpu.memory_space<vmem>>, vector<8x128xf32>,
    return
  }
  func.func @transform_0(%arg0: i32) -> (i32, i32) {
    %c0_i32 = arith.constant 0 : i32
    %c0_i32_0 = arith.constant 0 : i32
    %c0_i32_1 = arith.constant 0 : i32
    return %c0_i32, %c0_i32_0 : i32, i32
  }
  func.func @transform_1(%arg0: i32) -> (i32, i32) {
    %c0_i32 = arith.constant 0 : i32
    %c0_i32_0 = arith.constant 0 : i32
    %c0_i32_1 = arith.constant 0 : i32
    return %c0_i32, %c0_i32_0 : i32, i32
  }
  func.func @transform_2(%arg0: i32) -> (i32, i32) {
    %c0_i32 = arith.constant 0 : i32
    %c0_i32_0 = arith.constant 0 : i32
    %c0_i32_1 = arith.constant 0 : i32
    return %c0_i32, %c0_i32_0 : i32, i32
  }
  func.func @transform_3(%arg0: i32) -> (i32, i32) {
    %c0_i32 = arith.constant 0 : i32
    %c0_i32_0 = arith.constant 0 : i32
    %c0_i32_1 = arith.constant 0 : i32
    return %c0_i32, %c0_i32_0 : i32, i32
  }
  func.func @transform_4(%arg0: i32) -> (i32, i32) {
    %c0_i32 = arith.constant 0 : i32
    %c0_i32_0 = arith.constant 0 : i32
    %c0_i32_1 = arith.constant 0 : i32
    return %c0_i32, %c0_i32_0 : i32, i32
  }
  func.func @transform_5(%arg0: i32) -> (i32, i32) {
    %c0_i32 = arith.constant 0 : i32
    %c0_i32_0 = arith.constant 0 : i32
    %c0_i32_1 = arith.constant 0 : i32
    return %c0_i32, %c0_i32_0 : i32, i32
  }
  func.func @transform_6(%arg0: i32) -> (i32, i32) {
    %c0_i32 = arith.constant 0 : i32
    %c0_i32_0 = arith.constant 0 : i32
    %c0_i32_1 = arith.constant 0 : i32
    return %c0_i32, %c0_i32_0 : i32, i32
  }
  func.func @transform_7(%arg0: i32) -> (i32, i32) {
    %c0_i32 = arith.constant 0 : i32
    %c0_i32_0 = arith.constant 0 : i32
    %c0_i32_1 = arith.constant 0 : i32
    return %c0_i32, %c0_i32_0 : i32, i32
  }
}

</mosaic_0001>

<llo_original>
// kernel: tpu_custom_call.1
$region0: #{tpu_custom_call.1}
  #allocation0 [shape = 'u32[]', space=smem, size = 0x4, offset = 0x4, fixed_abs, tag = 'smem constant byte address 0x4 - core index']
  #allocation1 [shape = 'u32[144,128]{1,0:T(1,128)}', space=vmem, size = 0x12000, scoped, tag = 'internal scratch']
  %s0 = inlined_call_operand.hbm [shape: f32[8,32], index: 0, kind: input, shape index: {}]
  %s1 = inlined_call_operand.hbm [shape: f32[32,128], index: 1, kind: input, shape index: {}]
  %s2 = inlined_call_operand.vmem [shape: f32[1,128], index: 2, kind: input, shape index: {}]
  %s3 = inlined_call_operand.hbm [shape: f32[128,128], index: 3, kind: input, shape index: {}]
  %s4 = inlined_call_operand.vmem [shape: f32[1,128], index: 4, kind: input, shape index: {}]
  %s5 = inlined_call_operand.hbm [shape: f32[128,128], index: 5, kind: input, shape index: {}]
  %s6 = inlined_call_operand.vmem [shape: f32[1,128], index: 6, kind: input, shape index: {}]
  %s7 = inlined_call_operand.hbm [shape: f32[8,128], index: 7, kind: output, shape index: {}]
  %s8 = sld [smem:[#allocation0]]
  $region54: #{tpu_custom_call.1} parent=0
    _
  %s10 = ssub.s32 1, %s8
  %s11 = scalar_select 0, %s10, %s8
  $region1: #{tpu_custom_call.1} parent=0
    #allocation2 [shape = 'u8[4096]{0}', space=vmem, size = 0x1000, scoped, tag = 'input window, operand 0, single buffered']
    #allocation3 [shape = 's32[1]{0}', space=sflag, size = 0x4, scoped, tag = 'scoped memory for tpu_custom_call.1']
    #allocation4 [shape = 's32[1]{0}', space=sflag, size = 0x4, scoped, tag = 'scoped memory for tpu_custom_call.1']
    #allocation5 [shape = 'u8[16384]{0}', space=vmem, size = 0x4000, scoped, tag = 'input window, operand 1, single buffered']
    #allocation6 [shape = 's32[1]{0}', space=sflag, size = 0x4, scoped, tag = 'scoped memory for tpu_custom_call.1']
    #allocation7 [shape = 'u8[65536]{0}', space=vmem, size = 0x10000, scoped, tag = 'input window, operand 3, single buffered']
    #allocation8 [shape = 'u8[65536]{0}', space=vmem, size = 0x10000, scoped, tag = 'input window, operand 5, single buffered']
    #allocation9 [shape = 's32[1]{0}', space=sflag, size = 0x4, scoped, tag = 'scoped memory for tpu_custom_call.1']
    #allocation10 [shape = 'u8[4096]{0}', space=vmem, size = 0x1000, scoped, tag = 'output window, operand 0, single buffered']
    %12 = vsyncpa [#allocation3], 0
    %13 = vsyncpa [#allocation6], 0
    %14 = vsyncpa [#allocation9], 0
    %15 = vsyncpa [#allocation4], 0
    // Predicated region
    $region2: #{tpu_custom_call.1} parent=1 // pred_check
      _
    $region3: #{tpu_custom_call.1} parent=1 // pred_check_branch
      %17 = sbr.rel (0) target = $region5
    $region4: #{tpu_custom_call.1} parent=1 // pred_region
      %s19 = ssub.s32 128, 128
      %20 = vsyncadd [#allocation3], %s19
      %s22 = sshll.u32 [#allocation2], 4
      %s23 = int_to_ptr.vmem [resolvable:$true] %s22
      %25 = dma.hbm_to_vmem [thread:$0]  %s0, 128, %s23, [#allocation3]
    $region5: #{tpu_custom_call.1} parent=1 // pred_fallthru
      _
    // Predicated region
    $region6: #{tpu_custom_call.1} parent=1 // pred_check
      _
    $region7: #{tpu_custom_call.1} parent=1 // pred_check_branch
      %27 = sbr.rel (0) target = $region9
    $region8: #{tpu_custom_call.1} parent=1 // pred_region
      %s29 = ssub.s32 512, 512
      %30 = vsyncadd [#allocation6], %s29
      %s31 = sshll.u32 [#allocation5], 4
      %s32 = int_to_ptr.vmem [resolvable:$true] %s31
      %37 = dma.hbm_to_vmem [thread:$0]  %s1, 512, %s32, [#allocation6], 128, 128, 8
    $region9: #{tpu_custom_call.1} parent=1 // pred_fallthru
      _
    // Predicated region
    $region10: #{tpu_custom_call.1} parent=1 // pred_check
      _
    $region11: #{tpu_custom_call.1} parent=1 // pred_check_branch
      %39 = sbr.rel (0) target = $region13
    $region12: #{tpu_custom_call.1} parent=1 // pred_region
      _
    $region13: #{tpu_custom_call.1} parent=1 // pred_fallthru
      _
    // Predicated region
    $region14: #{tpu_custom_call.1} parent=1 // pred_check
      _
    $region15: #{tpu_custom_call.1} parent=1 // pred_check_branch
      %41 = sbr.rel (0) target = $region17
    $region16: #{tpu_custom_call.1} parent=1 // pred_region
      %s43 = ssub.s32 2048, 2048
      %44 = vsyncadd [#allocation6], %s43
      %s45 = sshll.u32 [#allocation7], 4
      %s46 = int_to_ptr.vmem [resolvable:$true] %s45
      %51 = dma.hbm_to_vmem [thread:$0]  %s3, 2048, %s46, [#allocation6], 128, 128, 8
    $region17: #{tpu_custom_call.1} parent=1 // pred_fallthru
      _
    // Predicated region
    $region18: #{tpu_custom_call.1} parent=1 // pred_check
      _
    $region19: #{tpu_custom_call.1} parent=1 // pred_check_branch
      %53 = sbr.rel (0) target = $region21
    $region20: #{tpu_custom_call.1} parent=1 // pred_region
      _
    $region21: #{tpu_custom_call.1} parent=1 // pred_fallthru
      _
    // Predicated region
    $region22: #{tpu_custom_call.1} parent=1 // pred_check
      _
    $region23: #{tpu_custom_call.1} parent=1 // pred_check_branch
      %55 = sbr.rel (0) target = $region25
    $region24: #{tpu_custom_call.1} parent=1 // pred_region
      %s57 = ssub.s32 2048, 2048
      %58 = vsyncadd [#allocation9], %s57
      %s59 = sshll.u32 [#allocation8], 4
      %s60 = int_to_ptr.vmem [resolvable:$true] %s59
      %65 = dma.hbm_to_vmem [thread:$0]  %s5, 2048, %s60, [#allocation9], 128, 128, 8
    $region25: #{tpu_custom_call.1} parent=1 // pred_fallthru
      _
    // Predicated region
    $region26: #{tpu_custom_call.1} parent=1 // pred_check
      _
    $region27: #{tpu_custom_call.1} parent=1 // pred_check_branch
      %67 = sbr.rel (0) target = $region29
    $region28: #{tpu_custom_call.1} parent=1 // pred_region
      _
    $region29: #{tpu_custom_call.1} parent=1 // pred_fallthru
      _
    // Predicated region
    $region30: #{tpu_custom_call.1} parent=1 // pred_check
      _
    $region31: #{tpu_custom_call.1} parent=1 // pred_check_branch
      %69 = sbr.rel (0) target = $region33
    $region32: #{tpu_custom_call.1} parent=1 // pred_region
      %70 = dma.done [#allocation3], 128
    $region33: #{tpu_custom_call.1} parent=1 // pred_fallthru
      _
    // Predicated region
    $region34: #{tpu_custom_call.1} parent=1 // pred_check
      _
    $region35: #{tpu_custom_call.1} parent=1 // pred_check_branch
      %72 = sbr.rel (0) target = $region37
    $region36: #{tpu_custom_call.1} parent=1 // pred_region
      %73 = dma.done [#allocation6], 512
    $region37: #{tpu_custom_call.1} parent=1 // pred_fallthru
      _
    // Predicated region
    $region38: #{tpu_custom_call.1} parent=1 // pred_check
      _
    $region39: #{tpu_custom_call.1} parent=1 // pred_check_branch
      %75 = sbr.rel (0) target = $region41
    $region40: #{tpu_custom_call.1} parent=1 // pred_region
      %76 = dma.done [#allocation6], 2048
    $region41: #{tpu_custom_call.1} parent=1 // pred_fallthru
      _
    // Predicated region
    $region42: #{tpu_custom_call.1} parent=1 // pred_check
      _
    $region43: #{tpu_custom_call.1} parent=1 // pred_check_branch
      %78 = sbr.rel (0) target = $region45
    $region44: #{tpu_custom_call.1} parent=1 // pred_region
      %79 = dma.done [#allocation9], 2048
    $region45: #{tpu_custom_call.1} parent=1 // pred_fallthru
      _
    %v80 = vld [vmem:[#allocation2] sm:$0xff]
    %v81 = vld [vmem:[#allocation5] sm:$0xff]
    %v82 = vld [vmem:[#allocation5 + $0x8] sm:$0xff]
    %v83 = vld [vmem:[#allocation5 + $0x10] sm:$0xff]
    %v84 = vld [vmem:[#allocation5 + $0x18] sm:$0xff]
    %v85 = vld [vmem:[%s2] sm:$0x1]
    %v86 = vld [vmem:[#allocation7] sm:$0xff]
    %v87 = vld [vmem:[#allocation7 + $0x8] sm:$0xff]
    %v88 = vld [vmem:[#allocation7 + $0x10] sm:$0xff]
    %v89 = vld [vmem:[#allocation7 + $0x18] sm:$0xff]
    %v90 = vld [vmem:[#allocation7 + $0x20] sm:$0xff]
    %v91 = vld [vmem:[#allocation7 + $0x28] sm:$0xff]
    %v92 = vld [vmem:[#allocation7 + $0x30] sm:$0xff]
    %v93 = vld [vmem:[#allocation7 + $0x38] sm:$0xff]
    %v94 = vld [vmem:[#allocation7 + $0x40] sm:$0xff]
    %v95 = vld [vmem:[#allocation7 + $0x48] sm:$0xff]
    %v96 = vld [vmem:[#allocation7 + $0x50] sm:$0xff]
    %v97 = vld [vmem:[#allocation7 + $0x58] sm:$0xff]
    %v98 = vld [vmem:[#allocation7 + $0x60] sm:$0xff]
    %v99 = vld [vmem:[#allocation7 + $0x68] sm:$0xff]
    %v100 = vld [vmem:[#allocation7 + $0x70] sm:$0xff]
    %v101 = vld [vmem:[#allocation7 + $0x78] sm:$0xff]
    %v102 = vld [vmem:[%s4] sm:$0x1]
    %v103 = vld [vmem:[#allocation8] sm:$0xff]
    %v104 = vld [vmem:[#allocation8 + $0x8] sm:$0xff]
    %v105 = vld [vmem:[#allocation8 + $0x10] sm:$0xff]
    %v106 = vld [vmem:[#allocation8 + $0x18] sm:$0xff]
    %v107 = vld [vmem:[#allocation8 + $0x20] sm:$0xff]
    %v108 = vld [vmem:[#allocation8 + $0x28] sm:$0xff]
    %v109 = vld [vmem:[#allocation8 + $0x30] sm:$0xff]
    %v110 = vld [vmem:[#allocation8 + $0x38] sm:$0xff]
    %v111 = vld [vmem:[#allocation8 + $0x40] sm:$0xff]
    %v112 = vld [vmem:[#allocation8 + $0x48] sm:$0xff]
    %v113 = vld [vmem:[#allocation8 + $0x50] sm:$0xff]
    %v114 = vld [vmem:[#allocation8 + $0x58] sm:$0xff]
    %v115 = vld [vmem:[#allocation8 + $0x60] sm:$0xff]
    %v116 = vld [vmem:[#allocation8 + $0x68] sm:$0xff]
    %v117 = vld [vmem:[#allocation8 + $0x70] sm:$0xff]
    %v118 = vld [vmem:[#allocation8 + $0x78] sm:$0xff]
    %v119 = vld [vmem:[%s6] sm:$0x1]
    %v121 = vlaneseq
    %v122 = vshrl.u32 %v121, 7
    %v123 = vsub.s32 0, %v122
    %v124 = vrot.slane %v85, %v123
    %vm126 = vcmask 261120
    %v128 = vsel %vm126, %v80, 0
    %130 = vmatprep.subr.mxu0 0.0
    %131 = vmatpush1.msra.mxu0 %v81
    %132 = vmatprep.subr.mxu0 0.0
    %133 = vmatpush1.msra.mxu0 %v82
    %134 = vmatprep.subr.mxu0 0.0
    %135 = vmatpush1.msra.mxu0 %v83
    %136 = vmatprep.subr.mxu0 0.0
    %137 = vmatpush1.msra.mxu0 %v84
    %138 = vmatprep.subr.mxu0 0.0
    %139 = vmatpush1.msra.mxu0 0.0
    %140 = vmatprep.subr.mxu0 0.0
    %141 = vmatpush1.msra.mxu0 0.0
    %142 = vmatprep.subr.mxu0 0.0
    %143 = vmatpush1.msra.mxu0 0.0
    %144 = vmatprep.subr.mxu0 0.0
    %145 = vmatpush1.msra.mxu0 0.0
    %146 = vmatprep.subr.mxu0 0.0
    %147 = vmatpush1.msra.mxu0 0.0
    %148 = vmatprep.subr.mxu0 0.0
    %149 = vmatpush1.msra.mxu0 0.0
    %150 = vmatprep.subr.mxu0 0.0
    %151 = vmatpush1.msra.mxu0 0.0
    %152 = vmatprep.subr.mxu0 0.0
    %153 = vmatpush1.msra.mxu0 0.0
    %154 = vmatprep.subr.mxu0 0.0
    %155 = vmatpush1.msra.mxu0 0.0
    %156 = vmatprep.subr.mxu0 0.0
    %157 = vmatpush1.msra.mxu0 0.0
    %158 = vmatprep.subr.mxu0 0.0
    %159 = vmatpush1.msra.mxu0 0.0
    %160 = vmatprep.subr.mxu0 0.0
    %161 = vmatpush1.msra.mxu0 0.0
    %162 = vmatprep.subr.mxu0 0.0
    %163 = vmatpush1.msra.mxu0 0.0
    %164 = vmatprep.subr.mxu0 0.0
    %165 = vmatpush1.msra.mxu0 0.0
    %166 = vmatprep.subr.mxu0 0.0
    %167 = vmatpush1.msra.mxu0 0.0
    %168 = vmatprep.subr.mxu0 0.0
    %169 = vmatpush1.msra.mxu0 0.0
    %170 = vmatprep.subr.mxu0 0.0
    %171 = vmatpush1.msra.mxu0 0.0
    %172 = vmatprep.subr.mxu0 0.0
    %173 = vmatpush1.msra.mxu0 0.0
    %174 = vmatprep.subr.mxu0 0.0
    %175 = vmatpush1.msra.mxu0 0.0
    %176 = vmatprep.subr.mxu0 0.0
    %177 = vmatpush1.msra.mxu0 0.0
    %178 = vmatprep.subr.mxu0 0.0
    %179 = vmatpush1.msra.mxu0 0.0
    %180 = vmatprep.subr.mxu0 0.0
    %181 = vmatpush1.msra.mxu0 0.0
    %182 = vmatprep.subr.mxu0 0.0
    %183 = vmatpush1.msra.mxu0 0.0
    %184 = vmatprep.subr.mxu0 0.0
    %185 = vmatpush1.msra.mxu0 0.0
    %186 = vmatprep.subr.mxu0 0.0
    %187 = vmatpush1.msra.mxu0 0.0
    %188 = vmatprep.subr.mxu0 0.0
    %189 = vmatpush1.msra.mxu0 0.0
    %190 = vmatprep.subr.mxu0 0.0
    %191 = vmatpush1.msra.mxu0 0.0
    %192 = vmatprep.subr.mxu0 0.0
    %193 = vmatpush1.msra.mxu0 0.0
    %194 = vmatprep.mubr.f32.mxu0 0.0
    %195 = vmatmul.mubr.f32.gmra.mrb[0].mxu0 %v128
    %v196 = vpop.f32.mrb[0].mxu0
    %v197 = vadd.f32 %v124, %v196
    %v198 = vpop.f32.mrb[0].mxu0
    %199 = vdwg.mxu0
    %v200 = vmax.f32 %v197, 0.0
    %v202 = vlaneseq
    %v203 = vshrl.u32 %v202, 7
    %v204 = vsub.s32 0, %v203
    %v205 = vrot.slane %v102, %v204
    %207 = vmatprep.subr.mxu0 0.0
    %208 = vmatpush1.msra.mxu0 %v86
    %209 = vmatprep.subr.mxu0 0.0
    %210 = vmatpush1.msra.mxu0 %v87
    %211 = vmatprep.subr.mxu0 0.0
    %212 = vmatpush1.msra.mxu0 %v88
    %213 = vmatprep.subr.mxu0 0.0
    %214 = vmatpush1.msra.mxu0 %v89
    %215 = vmatprep.subr.mxu0 0.0
    %216 = vmatpush1.msra.mxu0 %v90
    %217 = vmatprep.subr.mxu0 0.0
    %218 = vmatpush1.msra.mxu0 %v91
    %219 = vmatprep.subr.mxu0 0.0
    %220 = vmatpush1.msra.mxu0 %v92
    %221 = vmatprep.subr.mxu0 0.0
    %222 = vmatpush1.msra.mxu0 %v93
    %223 = vmatprep.subr.mxu0 0.0
    %224 = vmatpush1.msra.mxu0 %v94
    %225 = vmatprep.subr.mxu0 0.0
    %226 = vmatpush1.msra.mxu0 %v95
    %227 = vmatprep.subr.mxu0 0.0
    %228 = vmatpush1.msra.mxu0 %v96
    %229 = vmatprep.subr.mxu0 0.0
    %230 = vmatpush1.msra.mxu0 %v97
    %231 = vmatprep.subr.mxu0 0.0
    %232 = vmatpush1.msra.mxu0 %v98
    %233 = vmatprep.subr.mxu0 0.0
    %234 = vmatpush1.msra.mxu0 %v99
    %235 = vmatprep.subr.mxu0 0.0
    %236 = vmatpush1.msra.mxu0 %v100
    %237 = vmatprep.subr.mxu0 0.0
    %238 = vmatpush1.msra.mxu0 %v101
    %239 = vmatprep.subr.mxu0 0.0
    %240 = vmatpush1.msra.mxu0 0.0
    %241 = vmatprep.subr.mxu0 0.0
    %242 = vmatpush1.msra.mxu0 0.0
    %243 = vmatprep.subr.mxu0 0.0
    %244 = vmatpush1.msra.mxu0 0.0
    %245 = vmatprep.subr.mxu0 0.0
    %246 = vmatpush1.msra.mxu0 0.0
    %247 = vmatprep.subr.mxu0 0.0
    %248 = vmatpush1.msra.mxu0 0.0
    %249 = vmatprep.subr.mxu0 0.0
    %250 = vmatpush1.msra.mxu0 0.0
    %251 = vmatprep.subr.mxu0 0.0
    %252 = vmatpush1.msra.mxu0 0.0
    %253 = vmatprep.subr.mxu0 0.0
    %254 = vmatpush1.msra.mxu0 0.0
    %255 = vmatprep.subr.mxu0 0.0
    %256 = vmatpush1.msra.mxu0 0.0
    %257 = vmatprep.subr.mxu0 0.0
    %258 = vmatpush1.msra.mxu0 0.0
    %259 = vmatprep.subr.mxu0 0.0
    %260 = vmatpush1.msra.mxu0 0.0
    %261 = vmatprep.subr.mxu0 0.0
    %262 = vmatpush1.msra.mxu0 0.0
    %263 = vmatprep.subr.mxu0 0.0
    %264 = vmatpush1.msra.mxu0 0.0
    %265 = vmatprep.subr.mxu0 0.0
    %266 = vmatpush1.msra.mxu0 0.0
    %267 = vmatprep.subr.mxu0 0.0
    %268 = vmatpush1.msra.mxu0 0.0
    %269 = vmatprep.subr.mxu0 0.0
    %270 = vmatpush1.msra.mxu0 0.0
    %271 = vmatprep.mubr.f32.mxu0 0.0
    %272 = vmatmul.mubr.f32.gmra.mrb[0].mxu0 %v200
    %v273 = vpop.f32.mrb[0].mxu0
    %v274 = vadd.f32 %v205, %v273
    %v275 = vpop.f32.mrb[0].mxu0
    %276 = vdwg.mxu0
    %v277 = vmax.f32 %v274, 0.0
    %v279 = vlaneseq
    %v280 = vshrl.u32 %v279, 7
    %v281 = vsub.s32 0, %v280
    %v282 = vrot.slane %v119, %v281
    %284 = vmatprep.subr.mxu0 0.0
    %285 = vmatpush1.msra.mxu0 %v103
    %286 = vmatprep.subr.mxu0 0.0
    %287 = vmatpush1.msra.mxu0 %v104
    %288 = vmatprep.subr.mxu0 0.0
    %289 = vmatpush1.msra.mxu0 %v105
    %290 = vmatprep.subr.mxu0 0.0
    %291 = vmatpush1.msra.mxu0 %v106
    %292 = vmatprep.subr.mxu0 0.0
    %293 = vmatpush1.msra.mxu0 %v107
    %294 = vmatprep.subr.mxu0 0.0
    %295 = vmatpush1.msra.mxu0 %v108
    %296 = vmatprep.subr.mxu0 0.0
    %297 = vmatpush1.msra.mxu0 %v109
    %298 = vmatprep.subr.mxu0 0.0
    %299 = vmatpush1.msra.mxu0 %v110
    %300 = vmatprep.subr.mxu0 0.0
    %301 = vmatpush1.msra.mxu0 %v111
    %302 = vmatprep.subr.mxu0 0.0
    %303 = vmatpush1.msra.mxu0 %v112
    %304 = vmatprep.subr.mxu0 0.0
    %305 = vmatpush1.msra.mxu0 %v113
    %306 = vmatprep.subr.mxu0 0.0
    %307 = vmatpush1.msra.mxu0 %v114
    %308 = vmatprep.subr.mxu0 0.0
    %309 = vmatpush1.msra.mxu0 %v115
    %310 = vmatprep.subr.mxu0 0.0
    %311 = vmatpush1.msra.mxu0 %v116
    %312 = vmatprep.subr.mxu0 0.0
    %313 = vmatpush1.msra.mxu0 %v117
    %314 = vmatprep.subr.mxu0 0.0
    %315 = vmatpush1.msra.mxu0 %v118
    %316 = vmatprep.subr.mxu0 0.0
    %317 = vmatpush1.msra.mxu0 0.0
    %318 = vmatprep.subr.mxu0 0.0
    %319 = vmatpush1.msra.mxu0 0.0
    %320 = vmatprep.subr.mxu0 0.0
    %321 = vmatpush1.msra.mxu0 0.0
    %322 = vmatprep.subr.mxu0 0.0
    %323 = vmatpush1.msra.mxu0 0.0
    %324 = vmatprep.subr.mxu0 0.0
    %325 = vmatpush1.msra.mxu0 0.0
    %326 = vmatprep.subr.mxu0 0.0
    %327 = vmatpush1.msra.mxu0 0.0
    %328 = vmatprep.subr.mxu0 0.0
    %329 = vmatpush1.msra.mxu0 0.0
    %330 = vmatprep.subr.mxu0 0.0
    %331 = vmatpush1.msra.mxu0 0.0
    %332 = vmatprep.subr.mxu0 0.0
    %333 = vmatpush1.msra.mxu0 0.0
    %334 = vmatprep.subr.mxu0 0.0
    %335 = vmatpush1.msra.mxu0 0.0
    %336 = vmatprep.subr.mxu0 0.0
    %337 = vmatpush1.msra.mxu0 0.0
    %338 = vmatprep.subr.mxu0 0.0
    %339 = vmatpush1.msra.mxu0 0.0
    %340 = vmatprep.subr.mxu0 0.0
    %341 = vmatpush1.msra.mxu0 0.0
    %342 = vmatprep.subr.mxu0 0.0
    %343 = vmatpush1.msra.mxu0 0.0
    %344 = vmatprep.subr.mxu0 0.0
    %345 = vmatpush1.msra.mxu0 0.0
    %346 = vmatprep.subr.mxu0 0.0
    %347 = vmatpush1.msra.mxu0 0.0
    %348 = vmatprep.mubr.f32.mxu0 0.0
    %349 = vmatmul.mubr.f32.gmra.mrb[0].mxu0 %v277
    %v350 = vpop.f32.mrb[0].mxu0
    %v351 = vadd.f32 %v282, %v350
    %v352 = vpop.f32.mrb[0].mxu0
    %353 = vdwg.mxu0
    %v354 = vlaneseq
    %v355 = vshrl.u32 %v354, 7
    %vm356 = vcmp.lt.s32.totalorder %v355, 8
    %v357 = vsel %vm356, %v351, -1e+30
    %v358 = vrot.slane %v357, 4
    %v359 = vmax.f32 %v357, %v358
    %v360 = vrot.slane %v359, 2
    %v361 = vmax.f32 %v359, %v360
    %v362 = vrot.slane %v361, 1
    %v363 = vmax.f32 %v361, %v362
    %v364 = vsub.f32 %v357, %v363
    %v365 = vmul.f32 %v364, 1.442695
    %v366 = vpow.pop %v365
    %v367 = vrot.slane %v366, 4
    %v368 = vadd.f32 %v366, %v367
    %v369 = vrot.slane %v368, 2
    %v370 = vadd.f32 %v368, %v369
    %v371 = vrot.slane %v370, 1
    %v372 = vadd.f32 %v370, %v371
    %v373 = vrcp.pop %v372
    %v374 = vmul.f32 1.0, %v373
    %v375 = vmul.f32 %v366, %v374
    %376 = vst [vmem:[#allocation10] sm:$0xff] %v375
    // Predicated region
    $region46: #{tpu_custom_call.1} parent=1 // pred_check
      _
    $region47: #{tpu_custom_call.1} parent=1 // pred_check_branch
      %378 = sbr.rel (0) target = $region49
    $region48: #{tpu_custom_call.1} parent=1 // pred_region
      %s380 = ssub.s32 128, 128
      %381 = vsyncadd [#allocation4], %s380
      %s383 = sshll.u32 [#allocation10], 4
      %s384 = int_to_ptr.vmem [resolvable:$true] %s383
      %386 = dma.vmem_to_hbm [thread:$0]  %s384, 128, %s7, [#allocation4]
    $region49: #{tpu_custom_call.1} parent=1 // pred_fallthru
      _
    // Predicated region
    $region50: #{tpu_custom_call.1} parent=1 // pred_check
      _
    $region51: #{tpu_custom_call.1} parent=1 // pred_check_branch
      %388 = sbr.rel (0) target = $region53
    $region52: #{tpu_custom_call.1} parent=1 // pred_region
      %389 = dma.done [#allocation4], 128
    $region53: #{tpu_custom_call.1} parent=1 // pred_fallthru
      _
    %390 = vsyncpa [#allocation3], 1
    %391 = vsyncpa [#allocation6], 1
    %392 = vsyncpa [#allocation9], 1
    %393 = vsyncpa [#allocation4], 1

</llo_original>
